<compile_context>
chip_gen: v6e
topology: v6e:2x2x1
jax: 0.10.0
libtpu: 0.0.40
codegen_flags: <defaults>
</compile_context>

<pallas_src>
import functools

import jax
import jax.numpy as jnp
from jax import lax
from jax.experimental import pallas as pl
from jax.experimental.pallas import tpu as pltpu


def _focal_loss_kernel(x_ref, t_ref, a_ref, out_ref, acc_ref, *,
                       gamma, hw_total, tile_hw, num_hw_tiles, hw_per_split,
                       need_mask, reduce_out, uneven_split):
    h = pl.program_id(2)                       # hw step within this split
    hw_g = pl.program_id(0) * hw_per_split + h  # global hw-tile index (unclamped)

    @pl.when(h == 0)
    def _():
        acc_ref[...] = jnp.zeros_like(acc_ref)

    def accumulate():
        x = x_ref[...].astype(jnp.float32)      # (Nb, C, TILE_HW), classes on sublanes
        t = t_ref[...].astype(jnp.int32)        # (Nb, 1, TILE_HW) class ids

        # Numerically stable log_softmax over the class (sublane) axis.
        m = jnp.max(x, axis=1, keepdims=True)
        z = x - m
        lse = jnp.log(jnp.sum(jnp.exp(z), axis=1, keepdims=True))
        logsm = z - lse                         # (Nb, C, TILE_HW)

        # Gather log p_t and alpha_t via a one-hot select over the class axis.
        cls_ids = lax.broadcasted_iota(jnp.int32, x.shape, 1)
        onehot = cls_ids == t                   # (Nb, C, TILE_HW)
        logpt = jnp.sum(jnp.where(onehot, logsm, 0.0), axis=1, keepdims=True)
        at = jnp.sum(jnp.where(onehot, a_ref[...], 0.0), axis=1, keepdims=True)
        pt = jnp.exp(logpt)
        omp = 1.0 - pt

        # (1 - pt) ** gamma: integer gamma -> repeated multiplication (VALU only).
        g_int = int(gamma)
        if float(gamma) == float(g_int) and 0 <= g_int <= 16:
            focal = jnp.ones_like(omp)
            base = omp
            e = g_int
            while e > 0:
                if e & 1:
                    focal = focal * base
                e >>= 1
                if e:
                    base = base * base
        else:
            focal = jnp.power(omp, jnp.float32(gamma))

        loss = -1.0 * focal * logpt * at        # (Nb, 1, TILE_HW)

        if need_mask:
            # Mask only on the final (partial) spatial tile.
            def masked_add():
                lane = lax.broadcasted_iota(jnp.int32, loss.shape, 2)
                valid = (hw_g * tile_hw + lane) < hw_total
                acc_ref[...] += jnp.where(valid, loss, 0.0)

            def plain_add():
                acc_ref[...] += loss

            pl.when(hw_g == num_hw_tiles - 1)(masked_add)
            pl.when(hw_g < num_hw_tiles - 1)(plain_add)
        else:
            acc_ref[...] += loss

    if uneven_split:
        # The split's tail steps beyond the real tile count are skipped.
        pl.when(hw_g < num_hw_tiles)(accumulate)
    else:
        accumulate()

    @pl.when(h == hw_per_split - 1)
    def _():
        acc = acc_ref[...]                      # (Nb, 1, TILE_HW)
        if reduce_out:
            nb = acc.shape[0]
            red = acc.reshape(nb, tile_hw // 128, 128)
            out_ref[...] = jnp.sum(red, axis=1, keepdims=True)   # (Nb, 1, 128)
        else:
            out_ref[...] = acc


def focal_loss(logits_nchw, target, alpha=None, gamma=0.0, size_average=True,
               tile_hw=None, block_n=None):
    """Forward of FocalLoss(gamma, alpha, size_average) for NCHW logits."""
    N, C = logits_nchw.shape[0], logits_nchw.shape[1]
    x = logits_nchw.reshape(N, C, -1)           # contiguous collapse, no transpose
    HW = x.shape[2]

    # Targets: lane-dense, int8 when the class count allows (less HBM traffic).
    tgt_dtype = jnp.int8 if C <= 127 else jnp.int32
    t = target.reshape(N, 1, HW).astype(tgt_dtype)

    # alpha table indexed by class id (None -> ones, scalar -> [a, 1-a], list -> as-is).
    # NOTE: alpha shorter than C is padded with 1.0 (PyTorch would error on gather OOB).
    if alpha is None:
        alpha_vec = jnp.ones((C,), jnp.float32)
    elif isinstance(alpha, (float, int)) and not isinstance(alpha, bool):
        alpha_vec = jnp.asarray([float(alpha), 1.0 - float(alpha)], jnp.float32)
    else:
        alpha_vec = jnp.asarray(alpha, jnp.float32).reshape(-1)
    if alpha_vec.shape[0] < C:
        alpha_vec = jnp.concatenate(
            [alpha_vec, jnp.ones((C - alpha_vec.shape[0],), jnp.float32)])
    else:
        alpha_vec = alpha_vec[:C]
    alpha_arr = alpha_vec.reshape(1, C, 1)

    # Per-step logits budget: ~1 MiB of f32 counting the C -> 8-sublane padding.
    # Safe for double buffering + elementwise temporaries inside a 32 MiB scoped
    # VMEM limit on v5e/v6e/v7x.
    c_pad = ((C + 7) // 8) * 8
    budget_elems = (1 << 20) // 4

    if tile_hw is None:
        cap_hw = max(128, (budget_elems // c_pad) // 128 * 128)
        tile_hw = HW if HW <= cap_hw else cap_hw
    assert tile_hw == HW or tile_hw % 128 == 0, \
        "tile_hw must be HW or a multiple of 128"

    num_hw_tiles = pl.cdiv(HW, tile_hw)
    need_mask = (HW % tile_hw) != 0

    # Batch rows per grid step: largest divisor of N within the logits budget.
    if block_n is None:
        nb_cap = max(1, budget_elems // (c_pad * tile_hw))
        block_n = 1
        for d in range(min(N, nb_cap), 0, -1):
            if N % d == 0:
                block_n = d
                break
    assert N % block_n == 0
    num_n_blocks = N // block_n

    # Megacore robustness: if there is only one batch block, split the spatial
    # reduction into two independent halves so a second TensorCore (v7x) has work.
    num_splits = 2 if (num_n_blocks == 1 and num_hw_tiles >= 4) else 1
    hw_per_split = pl.cdiv(num_hw_tiles, num_splits)
    uneven_split = (num_splits * hw_per_split) != num_hw_tiles

    reduce_out = (tile_hw % 128 == 0)
    out_w = 128 if reduce_out else tile_hw      # non-128 case only when tile_hw == HW

    kernel = functools.partial(
        _focal_loss_kernel,
        gamma=float(gamma),
        hw_total=HW,
        tile_hw=tile_hw,
        num_hw_tiles=num_hw_tiles,
        hw_per_split=hw_per_split,
        need_mask=need_mask,
        reduce_out=reduce_out,
        uneven_split=uneven_split,
    )

    def hw_block(s, h):
        g = s * hw_per_split + h
        if uneven_split:
            g = jnp.minimum(g, num_hw_tiles - 1)   # clamp tail steps (skipped in-kernel)
        return g

    partials = pl.pallas_call(
        kernel,
        out_shape=jax.ShapeDtypeStruct((num_splits * N, 1, out_w), jnp.float32),
        grid_spec=pltpu.PrefetchScalarGridSpec(
            num_scalar_prefetch=0,
            grid=(num_splits, num_n_blocks, hw_per_split),
            in_specs=[
                pl.BlockSpec((block_n, C, tile_hw),
                             lambda s, n, h: (n, 0, hw_block(s, h))),   # logits
                pl.BlockSpec((block_n, 1, tile_hw),
                             lambda s, n, h: (n, 0, hw_block(s, h))),   # targets
                pl.BlockSpec((1, C, 1), lambda s, n, h: (0, 0, 0)),     # alpha table
            ],
            out_specs=pl.BlockSpec((block_n, 1, out_w),
                                   lambda s, n, h: (s * num_n_blocks + n, 0, 0)),
            scratch_shapes=[pltpu.VMEM((block_n, 1, tile_hw), jnp.float32)],
        ),
        compiler_params=pltpu.CompilerParams(
            dimension_semantics=("parallel", "parallel", "arbitrary"),
            vmem_limit_bytes=32 * 1024 * 1024,
        ),
    )(x, t, alpha_arr)

    total = jnp.sum(partials)
    rows = N * HW
    return total / jnp.float32(rows) if size_average else total


def focal_loss_ref(logits_nchw, target_nhw, alpha, gamma=0.0, size_average=True):
    """Pure-JAX reference mirroring the PyTorch forward."""
    N, C = logits_nchw.shape[0], logits_nchw.shape[1]
    x = logits_nchw.reshape(N, C, -1)
    x = jnp.transpose(x, (0, 2, 1)).reshape(-1, C)
    t = target_nhw.reshape(-1).astype(jnp.int32)
    logsm = jax.nn.log_softmax(x, axis=1)
    logpt = jnp.take_along_axis(logsm, t[:, None], axis=1)[:, 0]
    pt = jnp.exp(logpt)
    if alpha is not None:
        at = jnp.asarray(alpha, dtype=jnp.float32)[t]
        logpt = logpt * at
    loss = -1.0 * (1.0 - pt) ** gamma * logpt
    return jnp.mean(loss) if size_average else jnp.sum(loss)


if __name__ == "__main__":
    key = jax.random.PRNGKey(0)
    k1, k2 = jax.random.split(key)

    gamma = 2.0
    alpha = [0.1, 0.2, 0.3, 0.2, 0.2]   # per-class alpha (FocalLoss(alpha=list))

    # Case 1: batch=2, classes=5, spatial=16x16 (HW=256). Single grid step with
    # both batch rows blocked together (Nb=2), in-kernel 128-lane reduce.
    N, C, H, W = 2, 5, 16, 16
    logits = jax.random.normal(k1, (N, C, H, W), dtype=jnp.float32)
    target = jax.random.randint(k2, (N, H, W), 0, C, dtype=jnp.int32)
    loss = focal_loss(logits, target, alpha, gamma=gamma, size_average=True)
    loss = jax.block_until_ready(loss)
    ref = focal_loss_ref(logits, target, alpha, gamma=gamma, size_average=True)
    assert jnp.allclose(loss, ref, rtol=1e-5, atol=1e-6), (loss, ref)

    # Case 2: HW=320 with a forced tile of 128 -> multi-tile accumulation and
    # the partial-last-tile lane mask, size_average=False.
    H2, W2 = 16, 20
    logits2 = jax.random.normal(k1, (N, C, H2, W2), dtype=jnp.float32)
    target2 = jax.random.randint(k2, (N, H2, W2), 0, C, dtype=jnp.int32)
    loss2 = focal_loss(logits2, target2, alpha, gamma=gamma, size_average=False,
                       tile_hw=128)
    loss2 = jax.block_until_ready(loss2)
    ref2 = focal_loss_ref(logits2, target2, alpha, gamma=gamma, size_average=False)
    assert jnp.allclose(loss2, ref2, rtol=1e-5, atol=1e-4), (loss2, ref2)

    # Case 3: N=1, HW=512x300=153600 -> large tiles (tile_hw=32768, 5 tiles),
    # two-way spatial split (megacore path, uneven split with clamped index
    # map) plus the partial-last-tile mask and the in-kernel reduce.
    H3, W3 = 512, 300
    logits3 = jax.random.normal(k1, (1, C, H3, W3), dtype=jnp.float32)
    target3 = jax.random.randint(k2, (1, H3, W3), 0, C, dtype=jnp.int32)
    loss3 = focal_loss(logits3, target3, alpha, gamma=gamma, size_average=True)
    loss3 = jax.block_until_ready(loss3)
    ref3 = focal_loss_ref(logits3, target3, alpha, gamma=gamma, size_average=True)
    assert jnp.allclose(loss3, ref3, rtol=1e-4, atol=1e-6), (loss3, ref3)

    print("KERNEL_OK")
</pallas_src>

<mosaic_0001>
module attributes {stable_mosaic.version = 11 : i64} {
  func.func @_focal_loss_kernel(%arg0: i32, %arg1: i32, %arg2: i32, %arg3: memref<2x5x256xf32, #tpu.memory_space<vmem>>, %arg4: memref<2x1x256xi8, #tpu.memory_space<vmem>>, %arg5: memref<1x5x1xf32, #tpu.memory_space<vmem>>, %arg6: memref<2x1x128xf32, #tpu.memory_space<vmem>>, %arg7: memref<2x1x256xf32, #tpu.memory_space<vmem>>) attributes {dimension_semantics = [#tpu.dimension_semantics<parallel>, #tpu.dimension_semantics<parallel>, #tpu.dimension_semantics<arbitrary>], iteration_bounds = array<i64: 1, 1, 1>, scalar_prefetch = 0 : i64, scratch_operands = 1 : i64, tpu.core_type = #tpu.core_type<tc>, window_params = [{transform_indices = @transform_0, window_bounds = array<i64: 2, 5, 256>}, {transform_indices = @transform_1, window_bounds = array<i64: 2, 1, 256>}, {pipeline_mode = #tpu.pipeline_mode<synchronous>, transform_indices = @transform_2, window_bounds = array<i64: 1, 5, 1>}, {transform_indices = @transform_3, window_bounds = array<i64: 2, 1, 128>}]} {
    %c0_i32 = arith.constant 0 : i32
    %0 = arith.cmpi eq, %arg2, %c0_i32 : i32
    %1 = arith.extui %0 : i1 to i32
    %c0_i32_0 = arith.constant 0 : i32
    %2 = arith.cmpi ne, %1, %c0_i32_0 : i32
    scf.if %2 {
      %cst_25 = arith.constant 0.000000e+00 : f32
      %46 = vector.broadcast %cst_25 : f32 to vector<2x1x256xf32>
      %c0_26 = arith.constant 0 : index
      %c0_27 = arith.constant 0 : index
      %c0_28 = arith.constant 0 : index
      %47 = vector.load %arg7[%c0_26, %c0_27, %c0_28] : memref<2x1x256xf32, #tpu.memory_space<vmem>>, vector<2x1x256xf32>
      tpu.vector_store %arg7[%c0_26, %c0_27, %c0_28], %46 {strides = array<i32>} : memref<2x1x256xf32, #tpu.memory_space<vmem>>, vector<2x1x256xf32>,
    } else {
    }
    %c0 = arith.constant 0 : index
    %c0_1 = arith.constant 0 : index
    %c0_2 = arith.constant 0 : index
    %3 = vector.load %arg3[%c0, %c0_1, %c0_2] : memref<2x5x256xf32, #tpu.memory_space<vmem>>, vector<2x5x256xf32>
    %c0_3 = arith.constant 0 : index
    %c0_4 = arith.constant 0 : index
    %c0_5 = arith.constant 0 : index
    %4 = vector.load %arg4[%c0_3, %c0_4, %c0_5] : memref<2x1x256xi8, #tpu.memory_space<vmem>>, vector<2x1x256xi8>
    %5 = arith.extsi %4 : vector<2x1x256xi8> to vector<2x1x256xi32>
    %cst = arith.constant dense<0xFF800000> : vector<2x256xf32>
    %6 = vector.multi_reduction <maximumf>, %3, %cst [1] : vector<2x5x256xf32> to vector<2x256xf32>
    %7 = vector.shape_cast %6 : vector<2x256xf32> to vector<2x1x256xf32>
    %8 = vector.broadcast %7 : vector<2x1x256xf32> to vector<2x5x256xf32>
    %9 = arith.subf %3, %8 : vector<2x5x256xf32>
    %10 = math.exp %9 : vector<2x5x256xf32>
    %cst_6 = arith.constant dense<0.000000e+00> : vector<2x256xf32>
    %11 = vector.multi_reduction <add>, %10, %cst_6 [1] : vector<2x5x256xf32> to vector<2x256xf32>
    %12 = vector.shape_cast %11 : vector<2x256xf32> to vector<2x1x256xf32>
    %13 = math.log %12 : vector<2x1x256xf32>
    %14 = vector.broadcast %13 : vector<2x1x256xf32> to vector<2x5x256xf32>
    %15 = arith.subf %9, %14 : vector<2x5x256xf32>
    %16 = tpu.iota {dimensions = array<i32: 1>} : vector<2x5x256xi32>
    %17 = vector.broadcast %5 : vector<2x1x256xi32> to vector<2x5x256xi32>
    %18 = arith.cmpi eq, %16, %17 : vector<2x5x256xi32>
    %cst_7 = arith.constant 0.000000e+00 : f32
    %19 = vector.broadcast %cst_7 : f32 to vector<2x5x256xf32>
    %20 = arith.select %18, %15, %19 : vector<2x5x256xi1>, vector<2x5x256xf32>
    %cst_8 = arith.constant dense<0.000000e+00> : vector<2x256xf32>
    %21 = vector.multi_reduction <add>, %20, %cst_8 [1] : vector<2x5x256xf32> to vector<2x256xf32>
    %22 = vector.shape_cast %21 : vector<2x256xf32> to vector<2x1x256xf32>
    %c0_9 = arith.constant 0 : index
    %c0_10 = arith.constant 0 : index
    %c0_11 = arith.constant 0 : index
    %23 = vector.load %arg5[%c0_9, %c0_10, %c0_11] : memref<1x5x1xf32, #tpu.memory_space<vmem>>, vector<1x5x1xf32>
    %cst_12 = arith.constant 0.000000e+00 : f32
    %24 = vector.shape_cast %23 : vector<1x5x1xf32> to vector<1x5x1xf32>
    %25 = vector.broadcast %24 : vector<1x5x1xf32> to vector<2x5x256xf32>
    %26 = vector.broadcast %cst_12 : f32 to vector<2x5x256xf32>
    %27 = arith.select %18, %25, %26 : vector<2x5x256xi1>, vector<2x5x256xf32>
    %cst_13 = arith.constant dense<0.000000e+00> : vector<2x256xf32>
    %28 = vector.multi_reduction <add>, %27, %cst_13 [1] : vector<2x5x256xf32> to vector<2x256xf32>
    %29 = vector.shape_cast %28 : vector<2x256xf32> to vector<2x1x256xf32>
    %30 = math.exp %22 : vector<2x1x256xf32>
    %cst_14 = arith.constant 1.000000e+00 : f32
    %31 = vector.broadcast %cst_14 : f32 to vector<2x1x256xf32>
    %32 = arith.subf %31, %30 : vector<2x1x256xf32>
    %cst_15 = arith.constant 1.000000e+00 : f32
    %33 = vector.broadcast %cst_15 : f32 to vector<2x1x256xf32>
    %34 = arith.mulf %32, %32 : vector<2x1x256xf32>
    %35 = arith.mulf %33, %34 : vector<2x1x256xf32>
    %cst_16 = arith.constant -1.000000e+00 : f32
    %36 = vector.broadcast %cst_16 : f32 to vector<2x1x256xf32>
    %37 = arith.mulf %36, %35 : vector<2x1x256xf32>
    %38 = arith.mulf %37, %22 : vector<2x1x256xf32>
    %39 = arith.mulf %38, %29 : vector<2x1x256xf32>
    %c0_17 = arith.constant 0 : index
    %c0_18 = arith.constant 0 : index
    %c0_19 = arith.constant 0 : index
    %40 = vector.load %arg7[%c0_17, %c0_18, %c0_19] : memref<2x1x256xf32, #tpu.memory_space<vmem>>, vector<2x1x256xf32>
    %41 = arith.addf %40, %39 : vector<2x1x256xf32>
    %c0_20 = arith.constant 0 : index
    %c0_21 = arith.constant 0 : index
    %c0_22 = arith.constant 0 : index
    %42 = vector.load %arg7[%c0_20, %c0_21, %c0_22] : memref<2x1x256xf32, #tpu.memory_space<vmem>>, vector<2x1x256xf32>
    tpu.vector_store %arg7[%c0_20, %c0_21, %c0_22], %41 {strides = array<i32>} : memref<2x1x256xf32, #tpu.memory_space<vmem>>, vector<2x1x256xf32>,
    %c0_i32_23 = arith.constant 0 : i32
    %43 = arith.cmpi eq, %arg2, %c0_i32_23 : i32
    %44 = arith.extui %43 : i1 to i32
    %c0_i32_24 = arith.constant 0 : i32
    %45 = arith.cmpi ne, %44, %c0_i32_24 : i32
    scf.if %45 {
      %c0_25 = arith.constant 0 : index
      %c0_26 = arith.constant 0 : index
      %c0_27 = arith.constant 0 : index
      %46 = vector.load %arg7[%c0_25, %c0_26, %c0_27] : memref<2x1x256xf32, #tpu.memory_space<vmem>>, vector<2x1x256xf32>
      %47 = vector.shape_cast %46 : vector<2x1x256xf32> to vector<2x2x128xf32>
      %cst_28 = arith.constant dense<0.000000e+00> : vector<2x128xf32>
      %48 = vector.multi_reduction <add>, %47, %cst_28 [1] : vector<2x2x128xf32> to vector<2x128xf32>
      %49 = vector.shape_cast %48 : vector<2x128xf32> to vector<2x1x128xf32>
      %c0_29 = arith.constant 0 : index
      %c0_30 = arith.constant 0 : index
      %c0_31 = arith.constant 0 : index
      %50 = vector.load %arg6[%c0_29, %c0_30, %c0_31] : memref<2x1x128xf32, #tpu.memory_space<vmem>>, vector<2x1x128xf32>
      tpu.vector_store %arg6[%c0_29, %c0_30, %c0_31], %49 {strides = array<i32>} : memref<2x1x128xf32, #tpu.memory_space<vmem>>, vector<2x1x128xf32>,
    } else {
    }
    return
  }
  func.func @transform_0(%arg0: i32, %arg1: i32, %arg2: i32) -> (i32, i32, i32) {
    %c1_i32 = arith.constant 1 : i32
    %0 = arith.muli %arg0, %c1_i32 : i32
    %1 = arith.addi %0, %arg2 : i32
    %c0_i32 = arith.constant 0 : i32
    %c0_i32_0 = arith.constant 0 : i32
    return %arg1, %c0_i32, %1 : i32, i32, i32
  }
  func.func @transform_1(%arg0: i32, %arg1: i32, %arg2: i32) -> (i32, i32, i32) {
    %c1_i32 = arith.constant 1 : i32
    %0 = arith.muli %arg0, %c1_i32 : i32
    %1 = arith.addi %0, %arg2 : i32
    %c0_i32 = arith.constant 0 : i32
    %c0_i32_0 = arith.constant 0 : i32
    return %arg1, %c0_i32, %1 : i32, i32, i32
  }
  func.func @transform_2(%arg0: i32, %arg1: i32, %arg2: i32) -> (i32, i32, i32) {
    %c0_i32 = arith.constant 0 : i32
    %c0_i32_0 = arith.constant 0 : i32
    %c0_i32_1 = arith.constant 0 : i32
    %c0_i32_2 = arith.constant 0 : i32
    return %c0_i32, %c0_i32_0, %c0_i32_1 : i32, i32, i32
  }
  func.func @transform_3(%arg0: i32, %arg1: i32, %arg2: i32) -> (i32, i32, i32) {
    %c1_i32 = arith.constant 1 : i32
    %0 = arith.muli %arg0, %c1_i32 : i32
    %1 = arith.addi %0, %arg1 : i32
    %c0_i32 = arith.constant 0 : i32
    %c0_i32_0 = arith.constant 0 : i32
    %c0_i32_1 = arith.constant 0 : i32
    return %1, %c0_i32, %c0_i32_0 : i32, i32, i32
  }
}

</mosaic_0001>

<llo_original>
// kernel: tpu_custom_call.1
$region0: #{tpu_custom_call.1}
  #allocation0 [shape = 'u32[]', space=smem, size = 0x4, offset = 0x4, fixed_abs, tag = 'smem constant byte address 0x4 - core index']
  #allocation1 [shape = 'u32[144,128]{1,0:T(1,128)}', space=vmem, size = 0x12000, scoped, tag = 'internal scratch']
  #allocation2 [shape = 'f32[2,1,256]{2,1,0:T(1,128)}', space=vmem, size = 0x800, scoped, tag = 'scratch operand']
  %s0 = inlined_call_operand.vmem [shape: f32[2,5,256], index: 0, kind: input, shape index: {}]
  %s1 = inlined_call_operand.vmem [shape: s8[2,1,256], index: 1, kind: input, shape index: {}]
  %s2 = inlined_call_operand.vmem [shape: f32[1,5,1], index: 2, kind: input, shape index: {}]
  %s3 = inlined_call_operand.hbm [shape: f32[2,1,128], index: 3, kind: output, shape index: {}]
  %s4 = sld [smem:[#allocation0]]
  $region30: #{tpu_custom_call.1} parent=0
    _
  %s6 = ssub.s32 1, %s4
  %s7 = scalar_select 0, %s6, %s4
  $region1: #{tpu_custom_call.1} parent=0
    #allocation3 [shape = 'u8[1024]{0}', space=vmem, size = 0x400, scoped, tag = 'output window, operand 0, single buffered']
    #allocation4 [shape = 's32[1]{0}', space=sflag, size = 0x4, scoped, tag = 'scoped memory for tpu_custom_call.1']
    %8 = vsyncpa [#allocation4], 0
    // Predicated region
    $region2: #{tpu_custom_call.1} parent=1 // pred_check
      _
    $region3: #{tpu_custom_call.1} parent=1 // pred_check_branch
      %10 = sbr.rel (0) target = $region5
    $region4: #{tpu_custom_call.1} parent=1 // pred_region
      %s11 = sadd.s32 0, 0
      %s12 = smul.u32 2, %s11
      %p13 = scmp.lt.s32.totalorder %s12, 1
      %s14 = scalar_select %p13, %s12, 1
      %s15 = smul.addr %s14, 8
      %s16 = scalar_lea.vmem %s0, %s15
      %s17 = sadd.s32 0, 0
      %s18 = smul.u32 2, %s17
    $region5: #{tpu_custom_call.1} parent=1 // pred_fallthru
      _
    // Predicated region
    $region6: #{tpu_custom_call.1} parent=1 // pred_check
      _
    $region7: #{tpu_custom_call.1} parent=1 // pred_check_branch
      %20 = sbr.rel (0) target = $region9
    $region8: #{tpu_custom_call.1} parent=1 // pred_region
      %s21 = sadd.s32 0, 0
      %s22 = smul.u32 2, %s21
      %p23 = scmp.lt.s32.totalorder %s22, 1
      %s24 = scalar_select %p23, %s22, 1
      %s25 = scalar_lea.vmem %s1, %s24
      %s26 = sadd.s32 0, 0
      %s27 = smul.u32 2, %s26
    $region9: #{tpu_custom_call.1} parent=1 // pred_fallthru
      _
    // Predicated region
    $region10: #{tpu_custom_call.1} parent=1 // pred_check
      _
    $region11: #{tpu_custom_call.1} parent=1 // pred_check_branch
      %29 = sbr.rel (0) target = $region13
    $region12: #{tpu_custom_call.1} parent=1 // pred_region
      _
    $region13: #{tpu_custom_call.1} parent=1 // pred_fallthru
      _
    %s30 = sadd.s32 0, 0
    %s31 = smul.u32 2, %s30
    %p32 = scmp.lt.s32.totalorder %s31, 1
    %s33 = scalar_select %p32, %s31, 1
    %s34 = smul.addr %s33, 8
    %s35 = scalar_lea.vmem %s0, %s34
    %s36 = sadd.s32 0, 0
    %s37 = smul.u32 2, %s36
    %p38 = scmp.lt.s32.totalorder %s37, 1
    %s39 = scalar_select %p38, %s37, 1
    %s40 = scalar_lea.vmem %s1, %s39
    %s41 = sadd.s32 0, 0
    %s42 = smul.u32 2, %s41
    %p43 = scmp.lt.s32.totalorder %s42, 1
    %s44 = scalar_select %p43, %s42, 1
    %s45 = smul.addr %s44, 8
    %s46 = scalar_lea.vmem %s0, %s45
    %s47 = sadd.s32 0, 0
    %s48 = smul.u32 2, %s47
    %s49 = sadd.s32 0, 0
    %s50 = smul.u32 2, %s49
    %p51 = scmp.lt.s32.totalorder %s50, 1
    %s52 = scalar_select %p51, %s50, 1
    %s53 = scalar_lea.vmem %s1, %s52
    %s54 = sadd.s32 0, 0
    %s55 = smul.u32 2, %s54
    %s56 = sadd.s32 0, 0
    %s57 = smul.u32 2, %s56
    %p58 = scmp.eq.s32.totalorder 0, 0
    // Predicated region
    $region14: #{tpu_custom_call.1} parent=1 // pred_check
      %p59 = pneg %p58
    $region15: #{tpu_custom_call.1} parent=1 // pred_check_branch
      %61 = sbr.rel (%p59) target = $region17
    $region16: #{tpu_custom_call.1} parent=1 // pred_region
      %v62 = vlaneseq
      %vm63 = vcmp.ge.s32.totalorder %v62, 0
      %vm64 = vcmp.lt.s32.totalorder %v62, 256
      %vm65 = vmand %vm63, %vm64
      %66 = vst.msk [vmem:[#allocation2] sm:$0x3] %vm65, 0.0
      %67 = vst.msk [vmem:[#allocation2 + $0x2] sm:$0x3] %vm65, 0.0
    $region17: #{tpu_custom_call.1} parent=1 // pred_fallthru
      _
    %v68 = vld [vmem:[%s46] sm:$0x1f]
    %v69 = vld [vmem:[%s46 + $0x8] sm:$0x1f]
    %v70 = vld [vmem:[%s46 + $0x10] sm:$0x1f]
    %v71 = vld [vmem:[%s46 + $0x18] sm:$0x1f]
    %v72 = vld [vmem:[%s53] sm:$0x3]
    %v73 = vld [vmem:[%s53 + $0x2] sm:$0x3]
    %v74 = vunpack.c.0.s8 %v72
    %v75 = vunpack.c.0.s8 %v73
    %vm76 = vcmask 1044480
    %v77 = vsel %vm76, %v68, -inf
    %v78 = vrot.slane %v77, 4
    %v79 = vmax.f32 %v77, %v78
    %v80 = vrot.slane %v79, 2
    %v81 = vmax.f32 %v79, %v80
    %v82 = vrot.slane %v81, 1
    %v83 = vmax.f32 %v81, %v82
    %v84 = vsel %vm76, %v69, -inf
    %v85 = vrot.slane %v84, 4
    %v86 = vmax.f32 %v84, %v85
    %v87 = vrot.slane %v86, 2
    %v88 = vmax.f32 %v86, %v87
    %v89 = vrot.slane %v88, 1
    %v90 = vmax.f32 %v88, %v89
    %v91 = vsel %vm76, %v70, -inf
    %v92 = vrot.slane %v91, 4
    %v93 = vmax.f32 %v91, %v92
    %v94 = vrot.slane %v93, 2
    %v95 = vmax.f32 %v93, %v94
    %v96 = vrot.slane %v95, 1
    %v97 = vmax.f32 %v95, %v96
    %v98 = vsel %vm76, %v71, -inf
    %v99 = vrot.slane %v98, 4
    %v100 = vmax.f32 %v98, %v99
    %v101 = vrot.slane %v100, 2
    %v102 = vmax.f32 %v100, %v101
    %v103 = vrot.slane %v102, 1
    %v104 = vmax.f32 %v102, %v103
    %v105 = vsub.f32 %v68, %v83
    %v106 = vsub.f32 %v69, %v90
    %v107 = vsub.f32 %v70, %v97
    %v108 = vsub.f32 %v71, %v104
    %v109 = vmul.f32 %v105, 1.442695
    %v110 = vpow.pop %v109
    %v111 = vmul.f32 %v106, 1.442695
    %v112 = vpow.pop %v111
    %v113 = vmul.f32 %v107, 1.442695
    %v114 = vpow.pop %v113
    %v115 = vmul.f32 %v108, 1.442695
    %v116 = vpow.pop %v115
    %v117 = vsel %vm76, %v110, 0.0
    %v118 = vrot.slane %v117, 4
    %v119 = vadd.f32 %v117, %v118
    %v120 = vrot.slane %v119, 2
    %v121 = vadd.f32 %v119, %v120
    %v122 = vrot.slane %v121, 1
    %v123 = vadd.f32 %v121, %v122
    %v124 = vsel %vm76, %v112, 0.0
    %v125 = vrot.slane %v124, 4
    %v126 = vadd.f32 %v124, %v125
    %v127 = vrot.slane %v126, 2
    %v128 = vadd.f32 %v126, %v127
    %v129 = vrot.slane %v128, 1
    %v130 = vadd.f32 %v128, %v129
    %v131 = vsel %vm76, %v114, 0.0
    %v132 = vrot.slane %v131, 4
    %v133 = vadd.f32 %v131, %v132
    %v134 = vrot.slane %v133, 2
    %v135 = vadd.f32 %v133, %v134
    %v136 = vrot.slane %v135, 1
    %v137 = vadd.f32 %v135, %v136
    %v138 = vsel %vm76, %v116, 0.0
    %v139 = vrot.slane %v138, 4
    %v140 = vadd.f32 %v138, %v139
    %v141 = vrot.slane %v140, 2
    %v142 = vadd.f32 %v140, %v141
    %v143 = vrot.slane %v142, 1
    %v144 = vadd.f32 %v142, %v143
    %v145 = vlog2.pop %v123
    %v146 = vmul.f32 %v145, 0.6931472
    %v147 = vlog2.pop %v130
    %v148 = vmul.f32 %v147, 0.6931472
    %v149 = vlog2.pop %v137
    %v150 = vmul.f32 %v149, 0.6931472
    %v151 = vlog2.pop %v144
    %v152 = vmul.f32 %v151, 0.6931472
    %v153 = vsub.f32 %v105, %v146
    %v154 = vsub.f32 %v106, %v148
    %v155 = vsub.f32 %v107, %v150
    %v156 = vsub.f32 %v108, %v152
    %v157 = vlaneseq
    %v158 = vshrl.u32 %v157, 7
    %v159 = vlaneseq
    %v160 = vshrl.u32 %v159, 7
    %v161 = vsub.s32 0, %v160
    %v162 = vrot.slane %v74, %v161
    %v163 = vlaneseq
    %v164 = vshrl.u32 %v163, 7
    %v165 = vsub.s32 4, %v164
    %v166 = vrot.slane %v74, %v165
    %v167 = vlaneseq
    %v168 = vshrl.u32 %v167, 7
    %v169 = vsub.s32 0, %v168
    %v170 = vrot.slane %v75, %v169
    %v171 = vlaneseq
    %v172 = vshrl.u32 %v171, 7
    %v173 = vsub.s32 4, %v172
    %v174 = vrot.slane %v75, %v173
    %v175 = vlaneseq
    %v176 = vshrl.u32 %v175, 7
    %v177 = vsub.s32 0, %v176
    %v178 = vrot.slane %v162, %v177
    %v179 = vlaneseq
    %v180 = vshrl.u32 %v179, 7
    %v181 = vsub.s32 0, %v180
    %v182 = vrot.slane %v166, %v181
    %v183 = vlaneseq
    %v184 = vshrl.u32 %v183, 7
    %v185 = vsub.s32 0, %v184
    %v186 = vrot.slane %v170, %v185
    %v187 = vlaneseq
    %v188 = vshrl.u32 %v187, 7
    %v189 = vsub.s32 0, %v188
    %v190 = vrot.slane %v174, %v189
    %vm191 = vcmp.eq.s32.totalorder %v158, %v178
    %vm192 = vcmp.eq.s32.totalorder %v158, %v182
    %vm193 = vcmp.eq.s32.totalorder %v158, %v186
    %vm194 = vcmp.eq.s32.totalorder %v158, %v190
    %v195 = vsel %vm191, %v153, 0.0
    %v196 = vsel %vm192, %v154, 0.0
    %v197 = vsel %vm193, %v155, 0.0
    %v198 = vsel %vm194, %v156, 0.0
    %v199 = vsel %vm76, %v195, 0.0
    %v200 = vrot.slane %v199, 4
    %v201 = vadd.f32 %v199, %v200
    %v202 = vrot.slane %v201, 2
    %v203 = vadd.f32 %v201, %v202
    %v204 = vrot.slane %v203, 1
    %v205 = vadd.f32 %v203, %v204
    %v206 = vsel %vm76, %v196, 0.0
    %v207 = vrot.slane %v206, 4
    %v208 = vadd.f32 %v206, %v207
    %v209 = vrot.slane %v208, 2
    %v210 = vadd.f32 %v208, %v209
    %v211 = vrot.slane %v210, 1
    %v212 = vadd.f32 %v210, %v211
    %v213 = vsel %vm76, %v197, 0.0
    %v214 = vrot.slane %v213, 4
    %v215 = vadd.f32 %v213, %v214
    %v216 = vrot.slane %v215, 2
    %v217 = vadd.f32 %v215, %v216
    %v218 = vrot.slane %v217, 1
    %v219 = vadd.f32 %v217, %v218
    %v220 = vsel %vm76, %v198, 0.0
    %v221 = vrot.slane %v220, 4
    %v222 = vadd.f32 %v220, %v221
    %v223 = vrot.slane %v222, 2
    %v224 = vadd.f32 %v222, %v223
    %v225 = vrot.slane %v224, 1
    %v226 = vadd.f32 %v224, %v225
    %v227 = vld [vmem:[%s2] sm:$0x1f]
    %229 = vset.pattern.permute.xlu0 0
    %230 = vperm.xlu0 %229, %v227
    %v231 = vpop.permute.xlu0 %230
    %v233 = vsel %vm191, %v231, 0.0
    %v234 = vsel %vm192, %v231, 0.0
    %v235 = vsel %vm193, %v231, 0.0
    %v236 = vsel %vm194, %v231, 0.0
    %v237 = vsel %vm76, %v233, 0.0
    %v238 = vrot.slane %v237, 4
    %v239 = vadd.f32 %v237, %v238
    %v240 = vrot.slane %v239, 2
    %v241 = vadd.f32 %v239, %v240
    %v242 = vrot.slane %v241, 1
    %v243 = vadd.f32 %v241, %v242
    %v244 = vsel %vm76, %v234, 0.0
    %v245 = vrot.slane %v244, 4
    %v246 = vadd.f32 %v244, %v245
    %v247 = vrot.slane %v246, 2
    %v248 = vadd.f32 %v246, %v247
    %v249 = vrot.slane %v248, 1
    %v250 = vadd.f32 %v248, %v249
    %v251 = vsel %vm76, %v235, 0.0
    %v252 = vrot.slane %v251, 4
    %v253 = vadd.f32 %v251, %v252
    %v254 = vrot.slane %v253, 2
    %v255 = vadd.f32 %v253, %v254
    %v256 = vrot.slane %v255, 1
    %v257 = vadd.f32 %v255, %v256
    %v258 = vsel %vm76, %v236, 0.0
    %v259 = vrot.slane %v258, 4
    %v260 = vadd.f32 %v258, %v259
    %v261 = vrot.slane %v260, 2
    %v262 = vadd.f32 %v260, %v261
    %v263 = vrot.slane %v262, 1
    %v264 = vadd.f32 %v262, %v263
    %v265 = vmul.f32 %v205, 1.442695
    %v266 = vpow.pop %v265
    %v267 = vmul.f32 %v212, 1.442695
    %v268 = vpow.pop %v267
    %v269 = vmul.f32 %v219, 1.442695
    %v270 = vpow.pop %v269
    %v271 = vmul.f32 %v226, 1.442695
    %v272 = vpow.pop %v271
    %v273 = vsub.f32 1.0, %v266
    %v274 = vsub.f32 1.0, %v268
    %v275 = vsub.f32 1.0, %v270
    %v276 = vsub.f32 1.0, %v272
    %v277 = vmul.f32 %v273, %v273
    %v278 = vmul.f32 %v274, %v274
    %v279 = vmul.f32 %v275, %v275
    %v280 = vmul.f32 %v276, %v276
    %v281 = vmul.f32 %v277, -1.0
    %v282 = vmul.f32 %v278, -1.0
    %v283 = vmul.f32 %v279, -1.0
    %v284 = vmul.f32 %v280, -1.0
    %v285 = vmul.f32 %v281, %v205
    %v286 = vmul.f32 %v282, %v212
    %v287 = vmul.f32 %v283, %v219
    %v288 = vmul.f32 %v284, %v226
    %v289 = vmul.f32 %v285, %v243
    %v290 = vmul.f32 %v286, %v250
    %v291 = vmul.f32 %v287, %v257
    %v292 = vmul.f32 %v288, %v264
    %v293 = vld [vmem:[#allocation2] sm:$0x3]
    %v294 = vld [vmem:[#allocation2 + $0x2] sm:$0x3]
    %v299 = vcombine.low %v289, %v290
    %v301 = vunpack.c.l.s4 1966171168
    %v302 = vunpack.c.0.s8 %v301
    %v303 = vlaneseq
    %v304 = vshrl.u32 %v303, 7
    %v305 = vsub.s32 %v302, %v304
    %v306 = vrot.slane %v299, %v305
    %v308 = vunpack.c.l.s4 1966171168
    %v309 = vunpack.c.0.s8 %v308
    %v310 = vlaneseq
    %v311 = vshrl.u32 %v310, 7
    %v312 = vsub.s32 %v309, %v311
    %v313 = vrot.slane %v306, %v312
    %v314 = vcombine.low %v291, %v292
    %v316 = vunpack.c.l.s4 1966171168
    %v317 = vunpack.c.0.s8 %v316
    %v318 = vlaneseq
    %v319 = vshrl.u32 %v318, 7
    %v320 = vsub.s32 %v317, %v319
    %v321 = vrot.slane %v314, %v320
    %v323 = vunpack.c.l.s4 1966171168
    %v324 = vunpack.c.0.s8 %v323
    %v325 = vlaneseq
    %v326 = vshrl.u32 %v325, 7
    %v327 = vsub.s32 %v324, %v326
    %v328 = vrot.slane %v321, %v327
    %v331 = vadd.f32 %v293, %v313
    %v332 = vadd.f32 %v294, %v328
    %v333 = vlaneseq
    %vm334 = vcmp.ge.s32.totalorder %v333, 0
    %vm335 = vcmp.lt.s32.totalorder %v333, 256
    %vm336 = vmand %vm334, %vm335
    %337 = vst.msk [vmem:[#allocation2] sm:$0x3] %vm336, %v331
    %338 = vst.msk [vmem:[#allocation2 + $0x2] sm:$0x3] %vm336, %v332
    // Predicated region
    $region18: #{tpu_custom_call.1} parent=1 // pred_check
      %p339 = pneg %p58
    $region19: #{tpu_custom_call.1} parent=1 // pred_check_branch
      %341 = sbr.rel (%p339) target = $region21
    $region20: #{tpu_custom_call.1} parent=1 // pred_region
      %v342 = vld [vmem:[#allocation2] sm:$0x3]
      %v343 = vld [vmem:[#allocation2 + $0x2] sm:$0x3]
      %v346 = vrot.slane %v342, 1
      %v347 = vrot.slane %v343, 1
      %v348 = vcombine.low %v342, %v346
      %v350 = vunpack.c.l.s4 1966171168
      %v351 = vunpack.c.0.s8 %v350
      %v352 = vlaneseq
      %v353 = vshrl.u32 %v352, 7
      %v354 = vsub.s32 %v351, %v353
      %v355 = vrot.slane %v348, %v354
      %v357 = vunpack.c.l.s4 1966171168
      %v358 = vunpack.c.0.s8 %v357
      %v359 = vlaneseq
      %v360 = vshrl.u32 %v359, 7
      %v361 = vsub.s32 %v358, %v360
      %v362 = vrot.slane %v355, %v361
      %v363 = vcombine.low %v343, %v347
      %v365 = vunpack.c.l.s4 1966171168
      %v366 = vunpack.c.0.s8 %v365
      %v367 = vlaneseq
      %v368 = vshrl.u32 %v367, 7
      %v369 = vsub.s32 %v366, %v368
      %v370 = vrot.slane %v363, %v369
      %v372 = vunpack.c.l.s4 1966171168
      %v373 = vunpack.c.0.s8 %v372
      %v374 = vlaneseq
      %v375 = vshrl.u32 %v374, 7
      %v376 = vsub.s32 %v373, %v375
      %v377 = vrot.slane %v370, %v376
      %vm380 = vcmask 1041408
      %v381 = vsel %vm380, %v362, 0.0
      %v382 = vrot.slane %v381, 4
      %v383 = vadd.f32 %v381, %v382
      %v384 = vrot.slane %v383, 2
      %v385 = vadd.f32 %v383, %v384
      %v386 = vrot.slane %v385, 1
      %v387 = vadd.f32 %v385, %v386
      %v388 = vsel %vm380, %v377, 0.0
      %v389 = vrot.slane %v388, 4
      %v390 = vadd.f32 %v388, %v389
      %v391 = vrot.slane %v390, 2
      %v392 = vadd.f32 %v390, %v391
      %v393 = vrot.slane %v392, 1
      %v394 = vadd.f32 %v392, %v393
      %395 = vst [vmem:[#allocation3] sm:$0x1] %v387
      %396 = vst [vmem:[#allocation3 + $0x1] sm:$0x1] %v394
    $region21: #{tpu_custom_call.1} parent=1 // pred_fallthru
      _
    // Predicated region
    $region22: #{tpu_custom_call.1} parent=1 // pred_check
      _
    $region23: #{tpu_custom_call.1} parent=1 // pred_check_branch
      %398 = sbr.rel (0) target = $region25
    $region24: #{tpu_custom_call.1} parent=1 // pred_region
      %s399 = sadd.s32 0, 0
      %s400 = smul.u32 2, %s399
      %s402 = ssub.s32 32, 32
      %403 = vsyncadd [#allocation4], %s402
      %s404 = smul.addr %s400, 16
      %s405 = scalar_lea.hbm %s3, %s404
      %s406 = sshll.u32 [#allocation3], 4
      %s407 = int_to_ptr.vmem [resolvable:$true] %s406
      %412 = dma.vmem_to_hbm [thread:$0]  %s407, 32, %s405, [#allocation4], 16, 16, 1
    $region25: #{tpu_custom_call.1} parent=1 // pred_fallthru
      _
    // Predicated region
    $region26: #{tpu_custom_call.1} parent=1 // pred_check
      _
    $region27: #{tpu_custom_call.1} parent=1 // pred_check_branch
      %414 = sbr.rel (0) target = $region29
    $region28: #{tpu_custom_call.1} parent=1 // pred_region
      %415 = dma.done [#allocation4], 32
    $region29: #{tpu_custom_call.1} parent=1 // pred_fallthru
      _
    %416 = vsyncpa [#allocation4], 1

</llo_original>
